<compile_context>
chip_gen: v5e
topology: v5e:2x2
jax: 0.10.0
libtpu: 0.0.40
codegen_flags: <defaults>
</compile_context>

<pallas_src>
import jax
import jax.numpy as jnp
import numpy as np
from jax.experimental import pallas as pl
from jax.experimental.pallas import tpu as pltpu


def _round_up(n, m):
    return ((n + m - 1) // m) * m


def critic_kernel(x_ref, a_ref, w1_ref, b1_ref, w2x_ref, w2a_ref, b2_ref,
                  w3r_ref, b3_ref, out_ref):
    # In-kernel f32 -> bf16 cast (no HBM-materialised bf16 copy of x / a).
    x = x_ref[...].astype(jnp.bfloat16)          # (TB, S)

    # fc1 + ReLU  (MXU, f32 accumulation)
    h1 = jnp.dot(x, w1_ref[...], preferred_element_type=jnp.float32) + b1_ref[...]
    h1 = jnp.maximum(h1, 0.0)

    # fc2 on cat([h1, a], 1)  ==  h1 @ W2x + a @ W2a  (+ bias), then ReLU
    h2 = jnp.dot(h1.astype(jnp.bfloat16), w2x_ref[...],
                 preferred_element_type=jnp.float32)

    n_actions = a_ref.shape[1]
    if n_actions <= 8:
        # K is tiny: VPU broadcast-multiply-accumulate in f32 instead of a
        # wasteful MXU pass (systolic depth 128/256 with only a few live rows).
        a32 = a_ref[...]                          # already f32
        w2a = w2a_ref[...]                        # f32
        for j in range(n_actions):
            h2 = h2 + a32[:, j:j + 1] * w2a[j:j + 1, :]
    else:
        # Larger action dims: fold into a bf16 MXU dot (MXU has huge slack).
        h2 = h2 + jnp.dot(a_ref[...].astype(jnp.bfloat16),
                          w2a_ref[...].astype(jnp.bfloat16),
                          preferred_element_type=jnp.float32)

    h2 = jnp.maximum(h2 + b2_ref[...], 0.0)

    # fc3 (output width 1): VPU multiply + XLU cross-lane reduce, not MXU.
    q = jnp.sum(h2 * w3r_ref[...], axis=-1, keepdims=True) + b3_ref[0, 0]

    # Narrow (TB, 1) store: HBM writeback is TB*4 bytes (128x less than the
    # old 128-lane broadcast output).
    out_ref[...] = q


def critic_forward(x, a, prepared, tile_b=1024):
    """x: (B, nb_states) f32, a: (B, nb_actions) f32 -> (B, 1) f32."""
    w1, b1, w2x, w2a, b2, w3r, b3 = prepared
    B, S = x.shape
    A = a.shape[1]
    H1p = w1.shape[1]
    H2p = w2x.shape[1]

    # ---- balanced batch tiling -------------------------------------------
    MIN_TB = 16                                   # bf16 sublane packing unit
    num_tiles = max(1, pl.cdiv(B, tile_b))
    if num_tiles < 2 and B >= 2 * MIN_TB:
        num_tiles = 2                             # span both TCs on v7x
    TB = _round_up(pl.cdiv(B, num_tiles), MIN_TB)
    Bp = TB * num_tiles
    if Bp != B:
        x = jnp.pad(x, ((0, Bp - B), (0, 0)))
        a = jnp.pad(a, ((0, Bp - B), (0, 0)))

    def resident(shape):
        nd = len(shape)
        return pl.BlockSpec(shape, lambda i: (0,) * nd)

    weight_bytes = sum(int(np.prod(t.shape)) * t.dtype.itemsize
                       for t in (w1, b1, w2x, w2a, b2, w3r, b3))
    cost = pl.CostEstimate(
        flops=2 * Bp * (S * H1p + H1p * H2p + A * H2p + H2p),
        transcendentals=0,
        bytes_accessed=Bp * (S + A + 1) * 4 + weight_bytes)

    out = pl.pallas_call(
        critic_kernel,
        out_shape=jax.ShapeDtypeStruct((Bp, 1), jnp.float32),
        grid=(num_tiles,),
        in_specs=[
            pl.BlockSpec((TB, S), lambda i: (i, 0)),            # x tile (f32)
            pl.BlockSpec((TB, A), lambda i: (i, 0)),            # a tile (f32)
            resident(w1.shape),                                 # W1   (VMEM-resident)
            resident(b1.shape),                                 # b1
            resident(w2x.shape),                                # W2x
            resident(w2a.shape),                                # W2a (f32, VPU path)
            resident(b2.shape),                                 # b2
            resident(w3r.shape),                                # W3 row (f32)
            pl.BlockSpec(memory_space=pltpu.MemorySpace.SMEM),  # b3 scalar
        ],
        out_specs=pl.BlockSpec((TB, 1), lambda i: (i, 0)),
        compiler_params=pltpu.CompilerParams(
            dimension_semantics=("parallel",)),
        cost_estimate=cost,
    )(x, a, w1, b1, w2x, w2a, b2, w3r, b3)

    return out[:B]


def init_critic_params(key, nb_states, nb_actions, hidden1, hidden2,
                       init_w=0.003):
    """Deterministic re-implementation of Critic.__init__ / init_weights.

    Torch stores Linear weights as (out, in); here we store the transposed
    (in, out) layout directly.  fanin_init uses fanin = size[0] = out_features
    (as written in the reference code); biases keep the default nn.Linear
    uniform(-1/sqrt(in), 1/sqrt(in)) init.
    """
    ks = jax.random.split(key, 6)

    def uniform(k, shape, bound):
        return jax.random.uniform(k, shape, jnp.float32, -bound, bound)

    w1 = uniform(ks[0], (nb_states, hidden1), 1.0 / np.sqrt(hidden1))
    b1 = uniform(ks[1], (1, hidden1), 1.0 / np.sqrt(nb_states))
    w2 = uniform(ks[2], (hidden1 + nb_actions, hidden2), 1.0 / np.sqrt(hidden2))
    b2 = uniform(ks[3], (1, hidden2), 1.0 / np.sqrt(hidden1 + nb_actions))
    w3 = uniform(ks[4], (hidden2, 1), init_w)
    b3 = uniform(ks[5], (1, 1), 1.0 / np.sqrt(hidden2))
    return (w1, b1, w2, b2, w3, b3)


def prepare_params(params, hidden1, hidden2):
    """Pad hidden dims to multiples of 128 (zero pad: exact math preserved),
    split W2 row-wise, cast the MXU weights to bf16; keep biases, W2a (VPU
    path) and the W3 reduction row in f32."""
    w1, b1, w2, b2, w3, b3 = params
    h1p = _round_up(hidden1, 128)
    h2p = _round_up(hidden2, 128)

    w2x = w2[:hidden1, :]
    w2a = w2[hidden1:, :]

    w1p = jnp.pad(w1, ((0, 0), (0, h1p - hidden1))).astype(jnp.bfloat16)
    b1p = jnp.pad(b1, ((0, 0), (0, h1p - hidden1)))
    w2xp = jnp.pad(w2x, ((0, h1p - hidden1), (0, h2p - hidden2))).astype(jnp.bfloat16)
    w2ap = jnp.pad(w2a, ((0, 0), (0, h2p - hidden2)))          # f32
    b2p = jnp.pad(b2, ((0, 0), (0, h2p - hidden2)))
    w3r = jnp.pad(w3.T, ((0, 0), (0, h2p - hidden2)))          # (1, h2p) f32 row
    return (w1p, b1p, w2xp, w2ap, b2p, w3r, b3)


def critic_reference(x, a, prepared):
    """Pure-JAX reference mirroring the kernel's mixed precision exactly."""
    w1, b1, w2x, w2a, b2, w3r, b3 = prepared
    xb = x.astype(jnp.bfloat16)
    h1 = jnp.maximum(
        jnp.dot(xb, w1, preferred_element_type=jnp.float32) + b1, 0.0)
    h2 = jnp.dot(h1.astype(jnp.bfloat16), w2x,
                 preferred_element_type=jnp.float32)
    if a.shape[1] <= 8:
        h2 = h2 + jnp.dot(a, w2a)                               # f32 path
    else:
        h2 = h2 + jnp.dot(a.astype(jnp.bfloat16), w2a.astype(jnp.bfloat16),
                          preferred_element_type=jnp.float32)
    h2 = jnp.maximum(h2 + b2, 0.0)
    return jnp.sum(h2 * w3r, axis=-1, keepdims=True) + b3


if __name__ == "__main__":
    # Small shapes consistent with the module's forward.
    B = 2
    nb_states = 8
    nb_actions = 4
    hidden1 = 32
    hidden2 = 32

    key = jax.random.PRNGKey(0)
    kx, ka, kp = jax.random.split(key, 3)

    x = jax.random.normal(kx, (B, nb_states), jnp.float32)
    a = jax.random.normal(ka, (B, nb_actions), jnp.float32)

    raw_params = init_critic_params(kp, nb_states, nb_actions, hidden1, hidden2)
    params = prepare_params(raw_params, hidden1, hidden2)

    out = critic_forward(x, a, params)
    out = jax.block_until_ready(out)

    ref = critic_reference(x, a, params)
    assert out.shape == (B, 1), out.shape
    # bf16 matmul inputs / f32 accumulation is a deliberate precision trade;
    # the reference uses the same mixed precision, so tolerance stays tight.
    np.testing.assert_allclose(np.asarray(out), np.asarray(ref),
                               rtol=2e-3, atol=2e-3)

    print("KERNEL_OK")
</pallas_src>

<mosaic_0001>
module attributes {stable_mosaic.version = 11 : i64} {
  func.func @critic_kernel(%arg0: i32, %arg1: memref<16x8xf32, #tpu.memory_space<vmem>>, %arg2: memref<16x4xf32, #tpu.memory_space<vmem>>, %arg3: memref<8x128xbf16, #tpu.memory_space<vmem>>, %arg4: memref<1x128xf32, #tpu.memory_space<vmem>>, %arg5: memref<128x128xbf16, #tpu.memory_space<vmem>>, %arg6: memref<4x128xf32, #tpu.memory_space<vmem>>, %arg7: memref<1x128xf32, #tpu.memory_space<vmem>>, %arg8: memref<1x128xf32, #tpu.memory_space<vmem>>, %arg9: memref<1x1xf32, #tpu.memory_space<smem>>, %arg10: memref<16x1xf32, #tpu.memory_space<vmem>>) attributes {dimension_semantics = [#tpu.dimension_semantics<parallel>], iteration_bounds = array<i64: 1>, scalar_prefetch = 0 : i64, scratch_operands = 0 : i64, tpu.core_type = #tpu.core_type<tc>, window_params = [{transform_indices = @transform_0, window_bounds = array<i64: 16, 8>}, {transform_indices = @transform_1, window_bounds = array<i64: 16, 4>}, {pipeline_mode = #tpu.pipeline_mode<synchronous>, transform_indices = @transform_2, window_bounds = array<i64: 8, 128>}, {pipeline_mode = #tpu.pipeline_mode<synchronous>, transform_indices = @transform_3, window_bounds = array<i64: 1, 128>}, {pipeline_mode = #tpu.pipeline_mode<synchronous>, transform_indices = @transform_4, window_bounds = array<i64: 128, 128>}, {pipeline_mode = #tpu.pipeline_mode<synchronous>, transform_indices = @transform_5, window_bounds = array<i64: 4, 128>}, {pipeline_mode = #tpu.pipeline_mode<synchronous>, transform_indices = @transform_6, window_bounds = array<i64: 1, 128>}, {pipeline_mode = #tpu.pipeline_mode<synchronous>, transform_indices = @transform_7, window_bounds = array<i64: 1, 128>}, {transform_indices = @transform_8, window_bounds = array<i64: 1, 1>}, {transform_indices = @transform_9, window_bounds = array<i64: 16, 1>}]} {
    %c0 = arith.constant 0 : index
    %c0_0 = arith.constant 0 : index
    %0 = vector.load %arg1[%c0, %c0_0] : memref<16x8xf32, #tpu.memory_space<vmem>>, vector<16x8xf32>
    %1 = arith.truncf %0 : vector<16x8xf32> to vector<16x8xbf16>
    %c0_1 = arith.constant 0 : index
    %c0_2 = arith.constant 0 : index
    %2 = vector.load %arg3[%c0_1, %c0_2] : memref<8x128xbf16, #tpu.memory_space<vmem>>, vector<8x128xbf16>
    %cst = arith.constant dense<0.000000e+00> : vector<16x128xf32>
    %3 = tpu.matmul %1, %2, %cst {dimension_numbers = #tpu.dot_dimension_numbers<[1], [0], [0], [1], [0, 0, 1, 1], [], []>} : vector<16x8xbf16>, vector<8x128xbf16>, vector<16x128xf32> -> vector<16x128xf32>
    %c0_3 = arith.constant 0 : index
    %c0_4 = arith.constant 0 : index
    %4 = vector.load %arg4[%c0_3, %c0_4] : memref<1x128xf32, #tpu.memory_space<vmem>>, vector<1x128xf32>
    %5 = vector.broadcast %4 : vector<1x128xf32> to vector<16x128xf32>
    %6 = arith.addf %3, %5 : vector<16x128xf32>
    %cst_5 = arith.constant 0.000000e+00 : f32
    %7 = vector.broadcast %cst_5 : f32 to vector<16x128xf32>
    %8 = arith.maximumf %6, %7 : vector<16x128xf32>
    %9 = arith.truncf %8 : vector<16x128xf32> to vector<16x128xbf16>
    %c0_6 = arith.constant 0 : index
    %c0_7 = arith.constant 0 : index
    %10 = vector.load %arg5[%c0_6, %c0_7] : memref<128x128xbf16, #tpu.memory_space<vmem>>, vector<128x128xbf16>
    %cst_8 = arith.constant dense<0.000000e+00> : vector<16x128xf32>
    %11 = tpu.matmul %9, %10, %cst_8 {dimension_numbers = #tpu.dot_dimension_numbers<[1], [0], [0], [1], [0, 0, 1, 1], [], []>} : vector<16x128xbf16>, vector<128x128xbf16>, vector<16x128xf32> -> vector<16x128xf32>
    %c0_9 = arith.constant 0 : index
    %c0_10 = arith.constant 0 : index
    %12 = vector.load %arg2[%c0_9, %c0_10] : memref<16x4xf32, #tpu.memory_space<vmem>>, vector<16x4xf32>
    %c0_11 = arith.constant 0 : index
    %c0_12 = arith.constant 0 : index
    %13 = vector.load %arg6[%c0_11, %c0_12] : memref<4x128xf32, #tpu.memory_space<vmem>>, vector<4x128xf32>
    %14 = vector.extract_strided_slice %12 {offsets = [0, 0], sizes = [16, 1], strides = [1, 1]} : vector<16x4xf32> to vector<16x1xf32>
    %15 = vector.extract_strided_slice %13 {offsets = [0, 0], sizes = [1, 128], strides = [1, 1]} : vector<4x128xf32> to vector<1x128xf32>
    %16 = vector.broadcast %14 : vector<16x1xf32> to vector<16x128xf32>
    %17 = vector.broadcast %15 : vector<1x128xf32> to vector<16x128xf32>
    %18 = arith.mulf %16, %17 : vector<16x128xf32>
    %19 = arith.addf %11, %18 : vector<16x128xf32>
    %20 = vector.extract_strided_slice %12 {offsets = [0, 1], sizes = [16, 1], strides = [1, 1]} : vector<16x4xf32> to vector<16x1xf32>
    %21 = vector.extract_strided_slice %13 {offsets = [1, 0], sizes = [1, 128], strides = [1, 1]} : vector<4x128xf32> to vector<1x128xf32>
    %22 = vector.broadcast %20 : vector<16x1xf32> to vector<16x128xf32>
    %23 = vector.broadcast %21 : vector<1x128xf32> to vector<16x128xf32>
    %24 = arith.mulf %22, %23 : vector<16x128xf32>
    %25 = arith.addf %19, %24 : vector<16x128xf32>
    %26 = vector.extract_strided_slice %12 {offsets = [0, 2], sizes = [16, 1], strides = [1, 1]} : vector<16x4xf32> to vector<16x1xf32>
    %27 = vector.extract_strided_slice %13 {offsets = [2, 0], sizes = [1, 128], strides = [1, 1]} : vector<4x128xf32> to vector<1x128xf32>
    %28 = vector.broadcast %26 : vector<16x1xf32> to vector<16x128xf32>
    %29 = vector.broadcast %27 : vector<1x128xf32> to vector<16x128xf32>
    %30 = arith.mulf %28, %29 : vector<16x128xf32>
    %31 = arith.addf %25, %30 : vector<16x128xf32>
    %32 = vector.extract_strided_slice %12 {offsets = [0, 3], sizes = [16, 1], strides = [1, 1]} : vector<16x4xf32> to vector<16x1xf32>
    %33 = vector.extract_strided_slice %13 {offsets = [3, 0], sizes = [1, 128], strides = [1, 1]} : vector<4x128xf32> to vector<1x128xf32>
    %34 = vector.broadcast %32 : vector<16x1xf32> to vector<16x128xf32>
    %35 = vector.broadcast %33 : vector<1x128xf32> to vector<16x128xf32>
    %36 = arith.mulf %34, %35 : vector<16x128xf32>
    %37 = arith.addf %31, %36 : vector<16x128xf32>
    %c0_13 = arith.constant 0 : index
    %c0_14 = arith.constant 0 : index
    %38 = vector.load %arg7[%c0_13, %c0_14] : memref<1x128xf32, #tpu.memory_space<vmem>>, vector<1x128xf32>
    %39 = vector.broadcast %38 : vector<1x128xf32> to vector<16x128xf32>
    %40 = arith.addf %37, %39 : vector<16x128xf32>
    %cst_15 = arith.constant 0.000000e+00 : f32
    %41 = vector.broadcast %cst_15 : f32 to vector<16x128xf32>
    %42 = arith.maximumf %40, %41 : vector<16x128xf32>
    %c0_16 = arith.constant 0 : index
    %c0_17 = arith.constant 0 : index
    %43 = vector.load %arg8[%c0_16, %c0_17] : memref<1x128xf32, #tpu.memory_space<vmem>>, vector<1x128xf32>
    %44 = vector.broadcast %43 : vector<1x128xf32> to vector<16x128xf32>
    %45 = arith.mulf %42, %44 : vector<16x128xf32>
    %cst_18 = arith.constant dense<0.000000e+00> : vector<16xf32>
    %46 = vector.multi_reduction <add>, %45, %cst_18 [1] : vector<16x128xf32> to vector<16xf32>
    %47 = vector.shape_cast %46 : vector<16xf32> to vector<16x1xf32>
    %c0_19 = arith.constant 0 : index
    %c0_20 = arith.constant 0 : index
    %48 = memref.load %arg9[%c0_19, %c0_20] : memref<1x1xf32, #tpu.memory_space<smem>>
    %49 = vector.broadcast %48 : f32 to vector<16x1xf32>
    %50 = arith.addf %47, %49 : vector<16x1xf32>
    %c0_21 = arith.constant 0 : index
    %c0_22 = arith.constant 0 : index
    %51 = vector.load %arg10[%c0_21, %c0_22] : memref<16x1xf32, #tpu.memory_space<vmem>>, vector<16x1xf32>
    tpu.vector_store %arg10[%c0_21, %c0_22], %50 {strides = array<i32>} : memref<16x1xf32, #tpu.memory_space<vmem>>, vector<16x1xf32>,
    return
  }
  func.func @transform_0(%arg0: i32) -> (i32, i32) {
    %c0_i32 = arith.constant 0 : i32
    %c0_i32_0 = arith.constant 0 : i32
    return %arg0, %c0_i32 : i32, i32
  }
  func.func @transform_1(%arg0: i32) -> (i32, i32) {
    %c0_i32 = arith.constant 0 : i32
    %c0_i32_0 = arith.constant 0 : i32
    return %arg0, %c0_i32 : i32, i32
  }
  func.func @transform_2(%arg0: i32) -> (i32, i32) {
    %c0_i32 = arith.constant 0 : i32
    %c0_i32_0 = arith.constant 0 : i32
    %c0_i32_1 = arith.constant 0 : i32
    return %c0_i32, %c0_i32_0 : i32, i32
  }
  func.func @transform_3(%arg0: i32) -> (i32, i32) {
    %c0_i32 = arith.constant 0 : i32
    %c0_i32_0 = arith.constant 0 : i32
    %c0_i32_1 = arith.constant 0 : i32
    return %c0_i32, %c0_i32_0 : i32, i32
  }
  func.func @transform_4(%arg0: i32) -> (i32, i32) {
    %c0_i32 = arith.constant 0 : i32
    %c0_i32_0 = arith.constant 0 : i32
    %c0_i32_1 = arith.constant 0 : i32
    return %c0_i32, %c0_i32_0 : i32, i32
  }
  func.func @transform_5(%arg0: i32) -> (i32, i32) {
    %c0_i32 = arith.constant 0 : i32
    %c0_i32_0 = arith.constant 0 : i32
    %c0_i32_1 = arith.constant 0 : i32
    return %c0_i32, %c0_i32_0 : i32, i32
  }
  func.func @transform_6(%arg0: i32) -> (i32, i32) {
    %c0_i32 = arith.constant 0 : i32
    %c0_i32_0 = arith.constant 0 : i32
    %c0_i32_1 = arith.constant 0 : i32
    return %c0_i32, %c0_i32_0 : i32, i32
  }
  func.func @transform_7(%arg0: i32) -> (i32, i32) {
    %c0_i32 = arith.constant 0 : i32
    %c0_i32_0 = arith.constant 0 : i32
    %c0_i32_1 = arith.constant 0 : i32
    return %c0_i32, %c0_i32_0 : i32, i32
  }
  func.func @transform_8(%arg0: i32) -> (i32, i32) {
    %c0_i32 = arith.constant 0 : i32
    %c0_i32_0 = arith.constant 0 : i32
    %c0_i32_1 = arith.constant 0 : i32
    return %c0_i32, %c0_i32_0 : i32, i32
  }
  func.func @transform_9(%arg0: i32) -> (i32, i32) {
    %c0_i32 = arith.constant 0 : i32
    %c0_i32_0 = arith.constant 0 : i32
    return %arg0, %c0_i32 : i32, i32
  }
}

</mosaic_0001>

<llo_original>
// kernel: tpu_custom_call.1
$region0: #{tpu_custom_call.1}
  #allocation0 [shape = 'u32[]', space=smem, size = 0x4, offset = 0x4, fixed_abs, tag = 'smem constant byte address 0x4 - core index']
  #allocation1 [shape = 'u32[72,128]{1,0:T(1,128)}', space=vmem, size = 0x9000, scoped, tag = 'internal scratch']
  #allocation2 [shape = 'f32[1,1]{1,0:T(1,128)S(6)}', space=smem, size = 0x200, scoped, tag = 'scoped memory for tpu_custom_call.1']
  %s0 = inlined_call_operand.vmem [shape: f32[16,8], index: 0, kind: input, shape index: {}]
  %s1 = inlined_call_operand.vmem [shape: f32[16,4], index: 1, kind: input, shape index: {}]
  %s2 = inlined_call_operand.vmem [shape: bf16[8,128], index: 2, kind: input, shape index: {}]
  %s3 = inlined_call_operand.vmem [shape: f32[1,128], index: 3, kind: input, shape index: {}]
  %s4 = inlined_call_operand.hbm [shape: bf16[128,128], index: 4, kind: input, shape index: {}]
  %s5 = inlined_call_operand.vmem [shape: f32[4,128], index: 5, kind: input, shape index: {}]
  %s6 = inlined_call_operand.vmem [shape: f32[1,128], index: 6, kind: input, shape index: {}]
  %s7 = inlined_call_operand.vmem [shape: f32[1,128], index: 7, kind: input, shape index: {}]
  %s8 = inlined_call_operand.<no memory space> [shape: f32[1,1], index: 8, kind: input, shape index: {}]
  %s9 = inlined_call_operand.vmem [shape: f32[16,1], index: 9, kind: output, shape index: {}]
  %s10 = sld [smem:[#allocation0]]
  $region50: #{tpu_custom_call.1} parent=0
    _
  %s12 = ssub.s32 1, %s10
  %s13 = scalar_select 0, %s12, %s10
  %14 = sst [smem:[#allocation2]] %s8
  $region1: #{tpu_custom_call.1} parent=0
    #allocation3 [shape = 'u8[32768]{0}', space=vmem, size = 0x8000, scoped, tag = 'input window, operand 4, single buffered']
    #allocation4 [shape = 's32[1]{0}', space=sflag, size = 0x4, scoped, tag = 'scoped memory for tpu_custom_call.1']
    %15 = vsyncpa [#allocation4], 0
    // Predicated region
    $region2: #{tpu_custom_call.1} parent=1 // pred_check
      _
    $region3: #{tpu_custom_call.1} parent=1 // pred_check_branch
      %17 = sbr.rel (0) target = $region5
    $region4: #{tpu_custom_call.1} parent=1 // pred_region
      _
    $region5: #{tpu_custom_call.1} parent=1 // pred_fallthru
      _
    // Predicated region
    $region6: #{tpu_custom_call.1} parent=1 // pred_check
      _
    $region7: #{tpu_custom_call.1} parent=1 // pred_check_branch
      %19 = sbr.rel (0) target = $region9
    $region8: #{tpu_custom_call.1} parent=1 // pred_region
      _
    $region9: #{tpu_custom_call.1} parent=1 // pred_fallthru
      _
    // Predicated region
    $region10: #{tpu_custom_call.1} parent=1 // pred_check
      _
    $region11: #{tpu_custom_call.1} parent=1 // pred_check_branch
      %21 = sbr.rel (0) target = $region13
    $region12: #{tpu_custom_call.1} parent=1 // pred_region
      _
    $region13: #{tpu_custom_call.1} parent=1 // pred_fallthru
      _
    // Predicated region
    $region14: #{tpu_custom_call.1} parent=1 // pred_check
      _
    $region15: #{tpu_custom_call.1} parent=1 // pred_check_branch
      %23 = sbr.rel (0) target = $region17
    $region16: #{tpu_custom_call.1} parent=1 // pred_region
      _
    $region17: #{tpu_custom_call.1} parent=1 // pred_fallthru
      _
    // Predicated region
    $region18: #{tpu_custom_call.1} parent=1 // pred_check
      _
    $region19: #{tpu_custom_call.1} parent=1 // pred_check_branch
      %25 = sbr.rel (0) target = $region21
    $region20: #{tpu_custom_call.1} parent=1 // pred_region
      %27 = vsyncadd [#allocation4], 0
      %s28 = sshll.u32 %s4, 4
      %s29 = int_to_ptr.hbm [resolvable:$true] %s28
      %s30 = sshll.u32 [#allocation3], 4
      %s31 = int_to_ptr.vmem [resolvable:$true] %s30
      %36 = dma.hbm_to_vmem [thread:$0]  %s29, 1024, %s31, [#allocation4], 64, 64, 4
    $region21: #{tpu_custom_call.1} parent=1 // pred_fallthru
      _
    // Predicated region
    $region22: #{tpu_custom_call.1} parent=1 // pred_check
      _
    $region23: #{tpu_custom_call.1} parent=1 // pred_check_branch
      %38 = sbr.rel (0) target = $region25
    $region24: #{tpu_custom_call.1} parent=1 // pred_region
      _
    $region25: #{tpu_custom_call.1} parent=1 // pred_fallthru
      _
    // Predicated region
    $region26: #{tpu_custom_call.1} parent=1 // pred_check
      _
    $region27: #{tpu_custom_call.1} parent=1 // pred_check_branch
      %40 = sbr.rel (0) target = $region29
    $region28: #{tpu_custom_call.1} parent=1 // pred_region
      _
    $region29: #{tpu_custom_call.1} parent=1 // pred_fallthru
      _
    // Predicated region
    $region30: #{tpu_custom_call.1} parent=1 // pred_check
      _
    $region31: #{tpu_custom_call.1} parent=1 // pred_check_branch
      %42 = sbr.rel (0) target = $region33
    $region32: #{tpu_custom_call.1} parent=1 // pred_region
      _
    $region33: #{tpu_custom_call.1} parent=1 // pred_fallthru
      _
    // Predicated region
    $region34: #{tpu_custom_call.1} parent=1 // pred_check
      _
    $region35: #{tpu_custom_call.1} parent=1 // pred_check_branch
      %44 = sbr.rel (0) target = $region37
    $region36: #{tpu_custom_call.1} parent=1 // pred_region
      _
    $region37: #{tpu_custom_call.1} parent=1 // pred_fallthru
      _
    // Predicated region
    $region38: #{tpu_custom_call.1} parent=1 // pred_check
      _
    $region39: #{tpu_custom_call.1} parent=1 // pred_check_branch
      %46 = sbr.rel (0) target = $region41
    $region40: #{tpu_custom_call.1} parent=1 // pred_region
      %48 = dma.done [#allocation4], 1024
    $region41: #{tpu_custom_call.1} parent=1 // pred_fallthru
      _
    %v50 = vld [vmem:[%s0] sm:$0xff]
    %v51 = vld [vmem:[%s0 + $0x8] sm:$0xff]
    %v52 = vpack.c.bf16 %v51, %v50
    %v53 = vld [vmem:[%s2] sm:$0xf]
    %v54 = vld [vmem:[%s3] sm:$0x1]
    %v56 = vperm.slane %v54, 0
    %vm58 = vcmask 64512
    %v60 = vsel %vm58, %v52, 0
    %vm62 = vcmask 1043456
    %v64 = vsel %vm62, %v53, 0
    %66 = vmatpush.bf16.msra.mxu0 0
    %67 = vmatpush.bf16.msra.mxu0 0
    %68 = vmatpush.bf16.msra.mxu0 0
    %69 = vmatpush.bf16.msra.mxu0 0
    %70 = vmatpush.bf16.msra.mxu0 0
    %71 = vmatpush.bf16.msra.mxu0 0
    %72 = vmatpush.bf16.msra.mxu0 0
    %73 = vmatpush.bf16.msra.mxu0 %v64
    %74 = vmatmul.bf16.gmra.mxu0 %v60
    %v75 = vpop.f32.mrf.mxu0
    %v76 = vadd.f32 %v56, %v75
    %v77 = vpop.f32.mrf.mxu0
    %v78 = vadd.f32 %v56, %v77
    %79 = vdwg.mxu0
    %v80 = vmax.f32 %v76, 0.0
    %v81 = vmax.f32 %v78, 0.0
    %v82 = vpack.c.bf16 %v81, %v80
    %v83 = vld [vmem:[#allocation3] sm:$0xf]
    %v84 = vld [vmem:[#allocation3 + $0x4] sm:$0xf]
    %v85 = vld [vmem:[#allocation3 + $0x8] sm:$0xf]
    %v86 = vld [vmem:[#allocation3 + $0xc] sm:$0xf]
    %v87 = vld [vmem:[#allocation3 + $0x10] sm:$0xf]
    %v88 = vld [vmem:[#allocation3 + $0x14] sm:$0xf]
    %v89 = vld [vmem:[#allocation3 + $0x18] sm:$0xf]
    %v90 = vld [vmem:[#allocation3 + $0x1c] sm:$0xf]
    %v91 = vld [vmem:[#allocation3 + $0x20] sm:$0xf]
    %v92 = vld [vmem:[#allocation3 + $0x24] sm:$0xf]
    %v93 = vld [vmem:[#allocation3 + $0x28] sm:$0xf]
    %v94 = vld [vmem:[#allocation3 + $0x2c] sm:$0xf]
    %v95 = vld [vmem:[#allocation3 + $0x30] sm:$0xf]
    %v96 = vld [vmem:[#allocation3 + $0x34] sm:$0xf]
    %v97 = vld [vmem:[#allocation3 + $0x38] sm:$0xf]
    %v98 = vld [vmem:[#allocation3 + $0x3c] sm:$0xf]
    %v99 = vld [vmem:[%s1] sm:$0xff]
    %v100 = vld [vmem:[%s1 + $0x8] sm:$0xff]
    %v101 = vld [vmem:[%s5] sm:$0xf]
    %103 = vset.pattern.permute.xlu0 0
    %104 = vperm.xlu0 %103, %v99
    %v105 = vpop.permute.xlu0 %104
    %108 = vset.pattern.permute.xlu0 0
    %109 = vperm.xlu0 %108, %v100
    %v110 = vpop.permute.xlu0 %109
    %v112 = vperm.slane %v101, 0
    %v113 = vmul.f32 %v105, %v112
    %v114 = vmul.f32 %v110, %v112
    %v131 = vunpack.c.l.b16 %v83
    %v132 = vunpack.c.l.b16 %v84
    %v133 = vunpack.c.l.b16 %v85
    %v134 = vunpack.c.l.b16 %v86
    %v135 = vunpack.c.l.b16 %v87
    %v136 = vunpack.c.l.b16 %v88
    %v137 = vunpack.c.l.b16 %v89
    %v138 = vunpack.c.l.b16 %v90
    %v139 = vunpack.c.l.b16 %v91
    %v140 = vunpack.c.l.b16 %v92
    %v141 = vunpack.c.l.b16 %v93
    %v142 = vunpack.c.l.b16 %v94
    %v143 = vunpack.c.l.b16 %v95
    %v144 = vunpack.c.l.b16 %v96
    %v145 = vunpack.c.l.b16 %v97
    %v146 = vunpack.c.l.b16 %v98
    %v147 = vpack.c.b16 %v132, %v131
    %v148 = vpack.c.b16 %v134, %v133
    %v149 = vpack.c.b16 %v136, %v135
    %v150 = vpack.c.b16 %v138, %v137
    %v151 = vpack.c.b16 %v140, %v139
    %v152 = vpack.c.b16 %v142, %v141
    %v153 = vpack.c.b16 %v144, %v143
    %v154 = vpack.c.b16 %v146, %v145
    %163 = vmatpush.bf16.msra.mxu0 %v154
    %164 = vmatpush.bf16.msra.mxu0 %v153
    %165 = vmatpush.bf16.msra.mxu0 %v152
    %166 = vmatpush.bf16.msra.mxu0 %v151
    %167 = vmatpush.bf16.msra.mxu0 %v150
    %168 = vmatpush.bf16.msra.mxu0 %v149
    %169 = vmatpush.bf16.msra.mxu0 %v148
    %170 = vmatpush.bf16.msra.mxu0 %v147
    %171 = vmatmul.bf16.gmra.mxu0 %v82
    %v172 = vpop.f32.mrf.mxu0
    %v173 = vadd.f32 %v113, %v172
    %v174 = vpop.f32.mrf.mxu0
    %v175 = vadd.f32 %v114, %v174
    %176 = vdwg.mxu0
    %177 = vset.pattern.permute.xlu0 1
    %178 = vperm.xlu0 %177, %v99
    %v179 = vpop.permute.xlu0 %178
    %181 = vset.pattern.permute.xlu0 1
    %182 = vperm.xlu0 %181, %v100
    %v183 = vpop.permute.xlu0 %182
    %v185 = vperm.slane %v101, 1
    %v186 = vmul.f32 %v179, %v185
    %v187 = vmul.f32 %v183, %v185
    %v188 = vadd.f32 %v173, %v186
    %v189 = vadd.f32 %v175, %v187
    %190 = vset.pattern.permute.xlu0 2
    %191 = vperm.xlu0 %190, %v99
    %v192 = vpop.permute.xlu0 %191
    %194 = vset.pattern.permute.xlu0 2
    %195 = vperm.xlu0 %194, %v100
    %v196 = vpop.permute.xlu0 %195
    %v198 = vperm.slane %v101, 2
    %v199 = vmul.f32 %v192, %v198
    %v200 = vmul.f32 %v196, %v198
    %v201 = vadd.f32 %v188, %v199
    %v202 = vadd.f32 %v189, %v200
    %203 = vset.pattern.permute.xlu0 3
    %204 = vperm.xlu0 %203, %v99
    %v205 = vpop.permute.xlu0 %204
    %207 = vset.pattern.permute.xlu0 3
    %208 = vperm.xlu0 %207, %v100
    %v209 = vpop.permute.xlu0 %208
    %v211 = vperm.slane %v101, 3
    %v212 = vmul.f32 %v205, %v211
    %v213 = vmul.f32 %v209, %v211
    %v214 = vadd.f32 %v201, %v212
    %v215 = vadd.f32 %v202, %v213
    %v216 = vld [vmem:[%s6] sm:$0x1]
    %v218 = vperm.slane %v216, 0
    %v220 = vadd.f32 %v214, %v218
    %v221 = vadd.f32 %v215, %v218
    %v222 = vmax.f32 %v220, 0.0
    %v223 = vmax.f32 %v221, 0.0
    %v224 = vld [vmem:[%s7] sm:$0x1]
    %v226 = vperm.slane %v224, 0
    %v228 = vmul.f32 %v222, %v226
    %v229 = vmul.f32 %v223, %v226
    %230 = vadd.xlane.f32.xlu0 %v228
    %v231 = vpop.xlane.xlu0 %230
    %232 = vadd.xlane.f32.xlu0 %v229
    %v233 = vpop.xlane.xlu0 %232
    %s234 = sld [smem:[#allocation2]]
    %v235 = vstv %s234
    %v236 = vadd.f32 %v231, %v235
    %v237 = vadd.f32 %v233, %v235
    %vm238 = vcmask 7168
    %239 = vst.msk [vmem:[%s9] sm:$0xff] %vm238, %v236
    %240 = vst.msk [vmem:[%s9 + $0x8] sm:$0xff] %vm238, %v237
    // Predicated region
    $region42: #{tpu_custom_call.1} parent=1 // pred_check
      _
    $region43: #{tpu_custom_call.1} parent=1 // pred_check_branch
      %242 = sbr.rel (0) target = $region45
    $region44: #{tpu_custom_call.1} parent=1 // pred_region
      _
    $region45: #{tpu_custom_call.1} parent=1 // pred_fallthru
      _
    // Predicated region
    $region46: #{tpu_custom_call.1} parent=1 // pred_check
      _
    $region47: #{tpu_custom_call.1} parent=1 // pred_check_branch
      %244 = sbr.rel (0) target = $region49
    $region48: #{tpu_custom_call.1} parent=1 // pred_region
      _
    $region49: #{tpu_custom_call.1} parent=1 // pred_fallthru
      _
    %245 = vsyncpa [#allocation4], 1

</llo_original>
